<compile_context>
chip_gen: v6e
topology: v6e:2x2x1
jax: 0.10.0
libtpu: 0.0.40
codegen_flags: <defaults>
</compile_context>

<pallas_src>
import jax
import jax.numpy as jnp
from jax.experimental import pallas as pl
from jax.experimental.pallas import tpu as pltpu

_H1, _H2 = 64, 16  # hidden dims fixed by the PyTorch module


def _round_up(n, m):
    return ((n + m - 1) // m) * m


def _choose_tb(B, tb_max=2048, min_steps=8):
    """Pick a batch-row tile: multiple of 8, >= min_steps grid steps, <= tb_max."""
    tb = _round_up(max(1, -(-B // min_steps)), 8)   # cdiv then round to 8 sublanes
    return max(8, min(tb, _round_up(tb_max, 8)))


def mlp3_kernel(x_ref, w1_ref, b1_ref, w2_ref, b2_ref, w3_ref, b3_ref, o_ref):
    # x tile: (TB, D_in). Cast to bf16 so each matmul is a single bf16 MXU pass
    # with f32 accumulation; bias-add / ReLU stay in f32 on the VPU.
    x = x_ref[...].astype(jnp.bfloat16)

    # layer1: Linear(D_in, 64) + ReLU
    h1 = jnp.dot(x, w1_ref[...], preferred_element_type=jnp.float32)
    h1 = jnp.maximum(h1 + b1_ref[...], 0.0)

    # layer2: Linear(64, 16) + ReLU
    h2 = jnp.dot(h1.astype(jnp.bfloat16), w2_ref[...],
                 preferred_element_type=jnp.float32)
    h2 = jnp.maximum(h2 + b2_ref[...], 0.0)

    # layer3: Linear(16, D_out), no activation
    h3 = jnp.dot(h2.astype(jnp.bfloat16), w3_ref[...],
                 preferred_element_type=jnp.float32)
    o_ref[...] = (h3 + b3_ref[...]).astype(o_ref.dtype)


def mlp3_forward(x, params, *, tb=None):
    """x: [B, D_in]; params: dict of weights ([in, out], bf16) and biases ([1, out], f32)."""
    w1, b1 = params["w1"], params["b1"]
    w2, b2 = params["w2"], params["b2"]
    w3, b3 = params["w3"], params["b3"]

    B, D_in = x.shape
    D_out = w3.shape[1]

    # Batch row tile: multiple of 8 sublanes; keep enough grid steps for
    # pipelining / megacore without over-padding tiny batches.
    tb = _choose_tb(B) if tb is None else max(8, _round_up(tb, 8))
    grid = (pl.cdiv(B, tb),)

    # True (unpadded) footprint for XLA's scheduler.
    flops = 2 * B * (D_in * _H1 + _H1 * _H2 + _H2 * D_out)
    bytes_accessed = (
        x.dtype.itemsize * B * D_in                                   # x stream in
        + 4 * B * D_out                                               # output stream out
        + w1.dtype.itemsize * (D_in * _H1 + _H1 * _H2 + _H2 * D_out)  # weights
        + 4 * (_H1 + _H2 + D_out)                                     # biases
    )

    return pl.pallas_call(
        mlp3_kernel,
        out_shape=jax.ShapeDtypeStruct((B, D_out), jnp.float32),
        grid=grid,
        in_specs=[
            pl.BlockSpec((tb, D_in), lambda i: (i, 0)),    # x: streamed per batch tile
            pl.BlockSpec((D_in, _H1), lambda i: (0, 0)),   # weights/biases: VMEM-resident
            pl.BlockSpec((1, _H1), lambda i: (0, 0)),
            pl.BlockSpec((_H1, _H2), lambda i: (0, 0)),
            pl.BlockSpec((1, _H2), lambda i: (0, 0)),
            pl.BlockSpec((_H2, D_out), lambda i: (0, 0)),
            pl.BlockSpec((1, D_out), lambda i: (0, 0)),
        ],
        out_specs=pl.BlockSpec((tb, D_out), lambda i: (i, 0)),
        compiler_params=pltpu.CompilerParams(
            dimension_semantics=("parallel",),             # megacore split on v7x
        ),
        cost_estimate=pl.CostEstimate(
            flops=flops, transcendentals=0, bytes_accessed=bytes_accessed),
    )(x, w1, b1, w2, b2, w3, b3)


def init_mlp3_params(key, input_dim, output_dim):
    """Deterministic init matching the PyTorch layer shapes (weights stored [in, out])."""
    k1, k2, k3, k4, k5, k6 = jax.random.split(key, 6)

    def uniform(k, shape, fan_in, dtype=jnp.float32):
        bound = 1.0 / (fan_in ** 0.5)
        return jax.random.uniform(k, shape, jnp.float32, -bound, bound).astype(dtype)

    return {
        # bf16 weights for a single MXU pass; f32 biases for the VPU epilogue.
        "w1": uniform(k1, (input_dim, _H1), input_dim, jnp.bfloat16),
        "b1": uniform(k2, (1, _H1), input_dim),
        "w2": uniform(k3, (_H1, _H2), _H1, jnp.bfloat16),
        "b2": uniform(k4, (1, _H2), _H1),
        "w3": uniform(k5, (_H2, output_dim), _H2, jnp.bfloat16),
        "b3": uniform(k6, (1, output_dim), _H2),
    }


def mlp3_reference(x, p):
    """Pure-JAX reference mirroring the kernel's bf16-matmul / f32-accumulate math."""
    h1 = jnp.dot(x.astype(jnp.bfloat16), p["w1"], preferred_element_type=jnp.float32)
    h1 = jnp.maximum(h1 + p["b1"], 0.0)
    h2 = jnp.dot(h1.astype(jnp.bfloat16), p["w2"], preferred_element_type=jnp.float32)
    h2 = jnp.maximum(h2 + p["b2"], 0.0)
    h3 = jnp.dot(h2.astype(jnp.bfloat16), p["w3"], preferred_element_type=jnp.float32)
    return h3 + p["b3"]


if __name__ == "__main__":
    key = jax.random.PRNGKey(0)
    k_x, k_p = jax.random.split(key)

    # B=200 is not a multiple of the auto-chosen 32-row tile, exercising the
    # ragged tail block; D_out=8 exercises the narrow (unpadded) output store.
    batch, input_dim, output_dim = 200, 32, 8
    x = jax.random.normal(k_x, (batch, input_dim), jnp.float32)
    params = init_mlp3_params(k_p, input_dim, output_dim)

    out = jax.block_until_ready(mlp3_forward(x, params))
    ref = jax.block_until_ready(mlp3_reference(x, params))

    assert out.shape == (batch, output_dim), out.shape
    assert jnp.allclose(out, ref, atol=1e-3, rtol=1e-3), \
        float(jnp.max(jnp.abs(out - ref)))

    print("KERNEL_OK")
</pallas_src>

<mosaic_0001>
module attributes {stable_mosaic.version = 11 : i64} {
  func.func @mlp3_kernel(%arg0: i32, %arg1: memref<32x32xf32, #tpu.memory_space<vmem>>, %arg2: memref<32x64xbf16, #tpu.memory_space<vmem>>, %arg3: memref<1x64xf32, #tpu.memory_space<vmem>>, %arg4: memref<64x16xbf16, #tpu.memory_space<vmem>>, %arg5: memref<1x16xf32, #tpu.memory_space<vmem>>, %arg6: memref<16x8xbf16, #tpu.memory_space<vmem>>, %arg7: memref<1x8xf32, #tpu.memory_space<vmem>>, %arg8: memref<32x8xf32, #tpu.memory_space<vmem>>) attributes {dimension_semantics = [#tpu.dimension_semantics<parallel>], iteration_bounds = array<i64: 7>, scalar_prefetch = 0 : i64, scratch_operands = 0 : i64, tpu.core_type = #tpu.core_type<tc>, window_params = [{transform_indices = @transform_0, window_bounds = array<i64: 32, 32>}, {pipeline_mode = #tpu.pipeline_mode<synchronous>, transform_indices = @transform_1, window_bounds = array<i64: 32, 64>}, {pipeline_mode = #tpu.pipeline_mode<synchronous>, transform_indices = @transform_2, window_bounds = array<i64: 1, 64>}, {pipeline_mode = #tpu.pipeline_mode<synchronous>, transform_indices = @transform_3, window_bounds = array<i64: 64, 16>}, {pipeline_mode = #tpu.pipeline_mode<synchronous>, transform_indices = @transform_4, window_bounds = array<i64: 1, 16>}, {pipeline_mode = #tpu.pipeline_mode<synchronous>, transform_indices = @transform_5, window_bounds = array<i64: 16, 8>}, {pipeline_mode = #tpu.pipeline_mode<synchronous>, transform_indices = @transform_6, window_bounds = array<i64: 1, 8>}, {transform_indices = @transform_7, window_bounds = array<i64: 32, 8>}]} {
    %c0 = arith.constant 0 : index
    %c0_0 = arith.constant 0 : index
    %0 = vector.load %arg1[%c0, %c0_0] : memref<32x32xf32, #tpu.memory_space<vmem>>, vector<32x32xf32>
    %1 = arith.truncf %0 : vector<32x32xf32> to vector<32x32xbf16>
    %c0_1 = arith.constant 0 : index
    %c0_2 = arith.constant 0 : index
    %2 = vector.load %arg2[%c0_1, %c0_2] : memref<32x64xbf16, #tpu.memory_space<vmem>>, vector<32x64xbf16>
    %cst = arith.constant dense<0.000000e+00> : vector<32x64xf32>
    %3 = tpu.matmul %1, %2, %cst {dimension_numbers = #tpu.dot_dimension_numbers<[1], [0], [0], [1], [0, 0, 1, 1], [], []>} : vector<32x32xbf16>, vector<32x64xbf16>, vector<32x64xf32> -> vector<32x64xf32>
    %c0_3 = arith.constant 0 : index
    %c0_4 = arith.constant 0 : index
    %4 = vector.load %arg3[%c0_3, %c0_4] : memref<1x64xf32, #tpu.memory_space<vmem>>, vector<1x64xf32>
    %5 = vector.broadcast %4 : vector<1x64xf32> to vector<32x64xf32>
    %6 = arith.addf %3, %5 : vector<32x64xf32>
    %cst_5 = arith.constant 0.000000e+00 : f32
    %7 = vector.broadcast %cst_5 : f32 to vector<32x64xf32>
    %8 = arith.maximumf %6, %7 : vector<32x64xf32>
    %9 = arith.truncf %8 : vector<32x64xf32> to vector<32x64xbf16>
    %c0_6 = arith.constant 0 : index
    %c0_7 = arith.constant 0 : index
    %10 = vector.load %arg4[%c0_6, %c0_7] : memref<64x16xbf16, #tpu.memory_space<vmem>>, vector<64x16xbf16>
    %cst_8 = arith.constant dense<0.000000e+00> : vector<32x16xf32>
    %11 = tpu.matmul %9, %10, %cst_8 {dimension_numbers = #tpu.dot_dimension_numbers<[1], [0], [0], [1], [0, 0, 1, 1], [], []>} : vector<32x64xbf16>, vector<64x16xbf16>, vector<32x16xf32> -> vector<32x16xf32>
    %c0_9 = arith.constant 0 : index
    %c0_10 = arith.constant 0 : index
    %12 = vector.load %arg5[%c0_9, %c0_10] : memref<1x16xf32, #tpu.memory_space<vmem>>, vector<1x16xf32>
    %13 = vector.broadcast %12 : vector<1x16xf32> to vector<32x16xf32>
    %14 = arith.addf %11, %13 : vector<32x16xf32>
    %cst_11 = arith.constant 0.000000e+00 : f32
    %15 = vector.broadcast %cst_11 : f32 to vector<32x16xf32>
    %16 = arith.maximumf %14, %15 : vector<32x16xf32>
    %17 = arith.truncf %16 : vector<32x16xf32> to vector<32x16xbf16>
    %c0_12 = arith.constant 0 : index
    %c0_13 = arith.constant 0 : index
    %18 = vector.load %arg6[%c0_12, %c0_13] : memref<16x8xbf16, #tpu.memory_space<vmem>>, vector<16x8xbf16>
    %cst_14 = arith.constant dense<0.000000e+00> : vector<32x8xf32>
    %19 = tpu.matmul %17, %18, %cst_14 {dimension_numbers = #tpu.dot_dimension_numbers<[1], [0], [0], [1], [0, 0, 1, 1], [], []>} : vector<32x16xbf16>, vector<16x8xbf16>, vector<32x8xf32> -> vector<32x8xf32>
    %c0_15 = arith.constant 0 : index
    %c0_16 = arith.constant 0 : index
    %20 = vector.load %arg7[%c0_15, %c0_16] : memref<1x8xf32, #tpu.memory_space<vmem>>, vector<1x8xf32>
    %21 = vector.broadcast %20 : vector<1x8xf32> to vector<32x8xf32>
    %22 = arith.addf %19, %21 : vector<32x8xf32>
    %c0_17 = arith.constant 0 : index
    %c0_18 = arith.constant 0 : index
    %23 = vector.load %arg8[%c0_17, %c0_18] : memref<32x8xf32, #tpu.memory_space<vmem>>, vector<32x8xf32>
    tpu.vector_store %arg8[%c0_17, %c0_18], %22 {strides = array<i32>} : memref<32x8xf32, #tpu.memory_space<vmem>>, vector<32x8xf32>,
    return
  }
  func.func @transform_0(%arg0: i32) -> (i32, i32) {
    %c0_i32 = arith.constant 0 : i32
    %c0_i32_0 = arith.constant 0 : i32
    return %arg0, %c0_i32 : i32, i32
  }
  func.func @transform_1(%arg0: i32) -> (i32, i32) {
    %c0_i32 = arith.constant 0 : i32
    %c0_i32_0 = arith.constant 0 : i32
    %c0_i32_1 = arith.constant 0 : i32
    return %c0_i32, %c0_i32_0 : i32, i32
  }
  func.func @transform_2(%arg0: i32) -> (i32, i32) {
    %c0_i32 = arith.constant 0 : i32
    %c0_i32_0 = arith.constant 0 : i32
    %c0_i32_1 = arith.constant 0 : i32
    return %c0_i32, %c0_i32_0 : i32, i32
  }
  func.func @transform_3(%arg0: i32) -> (i32, i32) {
    %c0_i32 = arith.constant 0 : i32
    %c0_i32_0 = arith.constant 0 : i32
    %c0_i32_1 = arith.constant 0 : i32
    return %c0_i32, %c0_i32_0 : i32, i32
  }
  func.func @transform_4(%arg0: i32) -> (i32, i32) {
    %c0_i32 = arith.constant 0 : i32
    %c0_i32_0 = arith.constant 0 : i32
    %c0_i32_1 = arith.constant 0 : i32
    return %c0_i32, %c0_i32_0 : i32, i32
  }
  func.func @transform_5(%arg0: i32) -> (i32, i32) {
    %c0_i32 = arith.constant 0 : i32
    %c0_i32_0 = arith.constant 0 : i32
    %c0_i32_1 = arith.constant 0 : i32
    return %c0_i32, %c0_i32_0 : i32, i32
  }
  func.func @transform_6(%arg0: i32) -> (i32, i32) {
    %c0_i32 = arith.constant 0 : i32
    %c0_i32_0 = arith.constant 0 : i32
    %c0_i32_1 = arith.constant 0 : i32
    return %c0_i32, %c0_i32_0 : i32, i32
  }
  func.func @transform_7(%arg0: i32) -> (i32, i32) {
    %c0_i32 = arith.constant 0 : i32
    %c0_i32_0 = arith.constant 0 : i32
    return %arg0, %c0_i32 : i32, i32
  }
}

</mosaic_0001>

<llo_original>
// kernel: tpu_custom_call.1
$region0: #{tpu_custom_call.1}
  #allocation0 [shape = 'u32[]', space=smem, size = 0x4, offset = 0x4, fixed_abs, tag = 'smem constant byte address 0x4 - core index']
  #allocation1 [shape = 'u32[144,128]{1,0:T(1,128)}', space=vmem, size = 0x12000, scoped, tag = 'internal scratch']
  %s0 = inlined_call_operand.vmem [shape: f32[200,32], index: 0, kind: input, shape index: {}]
  %s1 = inlined_call_operand.vmem [shape: bf16[32,64], index: 1, kind: input, shape index: {}]
  %s2 = inlined_call_operand.vmem [shape: f32[1,64], index: 2, kind: input, shape index: {}]
  %s3 = inlined_call_operand.vmem [shape: bf16[64,16], index: 3, kind: input, shape index: {}]
  %s4 = inlined_call_operand.vmem [shape: f32[1,16], index: 4, kind: input, shape index: {}]
  %s5 = inlined_call_operand.vmem [shape: bf16[16,8], index: 5, kind: input, shape index: {}]
  %s6 = inlined_call_operand.vmem [shape: f32[1,8], index: 6, kind: input, shape index: {}]
  %s7 = inlined_call_operand.vmem [shape: f32[200,8], index: 7, kind: output, shape index: {}]
  %s8 = sld [smem:[#allocation0]]
  $region109: #{tpu_custom_call.1} parent=0
    _
  %s10 = ssub.s32 1, %s8
  %s11 = scalar_select 0, %s10, %s8
  $region1: #{tpu_custom_call.1} parent=0
    #allocation2 [shape = 'u8[32768]{0}', space=vmem, size = 0x8000, scoped, tag = 'output window, operand 0']
    loop: start=0, step=1, limit=9
    $region2: #{tpu_custom_call.1} parent=1 // loop_pre_header
      _
    $region3: #{tpu_custom_call.1} parent=1 // loop_header
      %s13 = sphi 0, %s17
      %p14 = scmp.ge.s32.totalorder %s13, 9
      %s23 = sphi 0, %s25
      %s26 = sphi 0, %s23
      %s27 = sphi 0, %s26
      %s43 = sphi 0, %s27
      %s47 = sphi 0, %s47
      %s49 = sphi 0, %s47
      %s50 = sphi 0, %s49
      %s64 = sphi 0, %s50
      %s68 = sphi 0, %s68
      %s70 = sphi 0, %s68
      %s71 = sphi 0, %s70
      %s85 = sphi 0, %s71
      %s89 = sphi 0, %s89
      %s91 = sphi 0, %s89
      %s92 = sphi 0, %s91
      %s106 = sphi 0, %s92
      %s110 = sphi 0, %s110
      %s112 = sphi 0, %s110
      %s113 = sphi 0, %s112
      %s127 = sphi 0, %s113
      %s131 = sphi 0, %s131
      %s133 = sphi 0, %s131
      %s134 = sphi 0, %s133
      %s148 = sphi 0, %s134
      %s152 = sphi 0, %s152
      %s154 = sphi 0, %s152
      %s155 = sphi 0, %s154
      %s169 = sphi 0, %s155
      %s175 = sphi 0, %s177
      %s178 = sphi 0, %s175
      %s179 = sphi 0, %s178
      %s195 = sphi 0, %s179
    $region4: #{tpu_custom_call.1} parent=1 // loop_header_branch
      %16 = sbr.rel (%p14) target = $region8
    $region5: #{tpu_custom_call.1} parent=1 // loop_body
      %s18 = ssub.s32 %s13, 1
      %s19 = ssub.s32 %s13, 2
      %s20 = sadd.s32 %s13, 1
      %s21 = ssub.s32 %s13, %s20
      %p22 = scmp.eq.s32.totalorder %s21, 0
      %s24 = sadd.s32 %s23, 1
      %s25 = scalar_select %p22, %s23, %s24
      %p28 = pneg %p22
      %p29 = scmp.eq.s32.totalorder %s13, 6
      %p30 = por %p28, %p29
      %p31 = scmp.ne.s32.totalorder %s23, %s26
      %p32 = scmp.eq.s32.totalorder %s13, 0
      %p33 = por %p31, %p32
      %p34 = scmp.ne.s32.totalorder %s23, %s26
      %p35 = scmp.eq.s32.totalorder %s18, 6
      %p36 = por %p34, %p35
      %p37 = scmp.ne.s32.totalorder %s26, %s27
      %p38 = scmp.eq.s32.totalorder %s18, 0
      %p39 = por %p37, %p38
      %p40 = scmp.ne.s32.totalorder %s26, %s27
      %p41 = scmp.eq.s32.totalorder %s19, 6
      %p42 = por %p40, %p41
      %p44 = scmp.ne.s32.totalorder %s27, %s43
      %p45 = scmp.eq.s32.totalorder %s19, 0
      %p46 = por %p44, %p45
      %s48 = sadd.s32 %s47, 1
      %p51 = scmp.eq.s32.totalorder %s13, 6
      %p52 = scmp.ne.s32.totalorder %s47, %s49
      %p53 = scmp.eq.s32.totalorder %s13, 0
      %p54 = por %p52, %p53
      %p55 = scmp.ne.s32.totalorder %s47, %s49
      %p56 = scmp.eq.s32.totalorder %s18, 6
      %p57 = por %p55, %p56
      %p58 = scmp.ne.s32.totalorder %s49, %s50
      %p59 = scmp.eq.s32.totalorder %s18, 0
      %p60 = por %p58, %p59
      %p61 = scmp.ne.s32.totalorder %s49, %s50
      %p62 = scmp.eq.s32.totalorder %s19, 6
      %p63 = por %p61, %p62
      %p65 = scmp.ne.s32.totalorder %s50, %s64
      %p66 = scmp.eq.s32.totalorder %s19, 0
      %p67 = por %p65, %p66
      %s69 = sadd.s32 %s68, 1
      %p72 = scmp.eq.s32.totalorder %s13, 6
      %p73 = scmp.ne.s32.totalorder %s68, %s70
      %p74 = scmp.eq.s32.totalorder %s13, 0
      %p75 = por %p73, %p74
      %p76 = scmp.ne.s32.totalorder %s68, %s70
      %p77 = scmp.eq.s32.totalorder %s18, 6
      %p78 = por %p76, %p77
      %p79 = scmp.ne.s32.totalorder %s70, %s71
      %p80 = scmp.eq.s32.totalorder %s18, 0
      %p81 = por %p79, %p80
      %p82 = scmp.ne.s32.totalorder %s70, %s71
      %p83 = scmp.eq.s32.totalorder %s19, 6
      %p84 = por %p82, %p83
      %p86 = scmp.ne.s32.totalorder %s71, %s85
      %p87 = scmp.eq.s32.totalorder %s19, 0
      %p88 = por %p86, %p87
      %s90 = sadd.s32 %s89, 1
      %p93 = scmp.eq.s32.totalorder %s13, 6
      %p94 = scmp.ne.s32.totalorder %s89, %s91
      %p95 = scmp.eq.s32.totalorder %s13, 0
      %p96 = por %p94, %p95
      %p97 = scmp.ne.s32.totalorder %s89, %s91
      %p98 = scmp.eq.s32.totalorder %s18, 6
      %p99 = por %p97, %p98
      %p100 = scmp.ne.s32.totalorder %s91, %s92
      %p101 = scmp.eq.s32.totalorder %s18, 0
      %p102 = por %p100, %p101
      %p103 = scmp.ne.s32.totalorder %s91, %s92
      %p104 = scmp.eq.s32.totalorder %s19, 6
      %p105 = por %p103, %p104
      %p107 = scmp.ne.s32.totalorder %s92, %s106
      %p108 = scmp.eq.s32.totalorder %s19, 0
      %p109 = por %p107, %p108
      %s111 = sadd.s32 %s110, 1
      %p114 = scmp.eq.s32.totalorder %s13, 6
      %p115 = scmp.ne.s32.totalorder %s110, %s112
      %p116 = scmp.eq.s32.totalorder %s13, 0
      %p117 = por %p115, %p116
      %p118 = scmp.ne.s32.totalorder %s110, %s112
      %p119 = scmp.eq.s32.totalorder %s18, 6
      %p120 = por %p118, %p119
      %p121 = scmp.ne.s32.totalorder %s112, %s113
      %p122 = scmp.eq.s32.totalorder %s18, 0
      %p123 = por %p121, %p122
      %p124 = scmp.ne.s32.totalorder %s112, %s113
      %p125 = scmp.eq.s32.totalorder %s19, 6
      %p126 = por %p124, %p125
      %p128 = scmp.ne.s32.totalorder %s113, %s127
      %p129 = scmp.eq.s32.totalorder %s19, 0
      %p130 = por %p128, %p129
      %s132 = sadd.s32 %s131, 1
      %p135 = scmp.eq.s32.totalorder %s13, 6
      %p136 = scmp.ne.s32.totalorder %s131, %s133
      %p137 = scmp.eq.s32.totalorder %s13, 0
      %p138 = por %p136, %p137
      %p139 = scmp.ne.s32.totalorder %s131, %s133
      %p140 = scmp.eq.s32.totalorder %s18, 6
      %p141 = por %p139, %p140
      %p142 = scmp.ne.s32.totalorder %s133, %s134
      %p143 = scmp.eq.s32.totalorder %s18, 0
      %p144 = por %p142, %p143
      %p145 = scmp.ne.s32.totalorder %s133, %s134
      %p146 = scmp.eq.s32.totalorder %s19, 6
      %p147 = por %p145, %p146
      %p149 = scmp.ne.s32.totalorder %s134, %s148
      %p150 = scmp.eq.s32.totalorder %s19, 0
      %p151 = por %p149, %p150
      %s153 = sadd.s32 %s152, 1
      %p156 = scmp.eq.s32.totalorder %s13, 6
      %p157 = scmp.ne.s32.totalorder %s152, %s154
      %p158 = scmp.eq.s32.totalorder %s13, 0
      %p159 = por %p157, %p158
      %p160 = scmp.ne.s32.totalorder %s152, %s154
      %p161 = scmp.eq.s32.totalorder %s18, 6
      %p162 = por %p160, %p161
      %p163 = scmp.ne.s32.totalorder %s154, %s155
      %p164 = scmp.eq.s32.totalorder %s18, 0
      %p165 = por %p163, %p164
      %p166 = scmp.ne.s32.totalorder %s154, %s155
      %p167 = scmp.eq.s32.totalorder %s19, 6
      %p168 = por %p166, %p167
      %p170 = scmp.ne.s32.totalorder %s155, %s169
      %p171 = scmp.eq.s32.totalorder %s19, 0
      %p172 = por %p170, %p171
      %s173 = ssub.s32 %s13, %s20
      %p174 = scmp.eq.s32.totalorder %s173, 0
      %s176 = sadd.s32 %s175, 1
      %s177 = scalar_select %p174, %s175, %s176
      %p180 = pneg %p174
      %p181 = scmp.eq.s32.totalorder %s13, 6
      %p182 = por %p180, %p181
      %p183 = scmp.ne.s32.totalorder %s175, %s178
      %p184 = scmp.eq.s32.totalorder %s13, 0
      %p185 = por %p183, %p184
      %p186 = scmp.ne.s32.totalorder %s175, %s178
      %p187 = scmp.eq.s32.totalorder %s18, 6
      %p188 = por %p186, %p187
      %p189 = scmp.ne.s32.totalorder %s178, %s179
      %p190 = scmp.eq.s32.totalorder %s18, 0
      %p191 = por %p189, %p190
      %p192 = scmp.ne.s32.totalorder %s178, %s179
      %p193 = scmp.eq.s32.totalorder %s19, 6
      %p194 = por %p192, %p193
      %p196 = scmp.ne.s32.totalorder %s179, %s195
      %p197 = scmp.eq.s32.totalorder %s19, 0
      %p198 = por %p196, %p197
      %p199 = scmp.le.s32.totalorder 1, %s13
      %p200 = scmp.lt.s32.totalorder %s13, 8
      %p201 = pnand %p199, %p200
      %p202 = pneg %p201
      // Predicated region
      $region9: #{tpu_custom_call.1} parent=5 // pred_check
        _
      $region10: #{tpu_custom_call.1} parent=5 // pred_check_branch
        %204 = sbr.rel (%p201) target = $region12
      $region11: #{tpu_custom_call.1} parent=5 // pred_region
        %s205 = ssub.s32 %s13, 1
        // Predicated region
        $region13: #{tpu_custom_call.1} parent=11 // pred_check
          %p206 = pneg %p60
        $region14: #{tpu_custom_call.1} parent=11 // pred_check_branch
          %208 = sbr.rel (%p206) target = $region16
        $region15: #{tpu_custom_call.1} parent=11 // pred_region
          _
        $region16: #{tpu_custom_call.1} parent=11 // pred_fallthru
          _
        // Predicated region
        $region17: #{tpu_custom_call.1} parent=11 // pred_check
          %p209 = pneg %p81
        $region18: #{tpu_custom_call.1} parent=11 // pred_check_branch
          %211 = sbr.rel (%p209) target = $region20
        $region19: #{tpu_custom_call.1} parent=11 // pred_region
          _
        $region20: #{tpu_custom_call.1} parent=11 // pred_fallthru
          _
        // Predicated region
        $region21: #{tpu_custom_call.1} parent=11 // pred_check
          %p212 = pneg %p102
        $region22: #{tpu_custom_call.1} parent=11 // pred_check_branch
          %214 = sbr.rel (%p212) target = $region24
        $region23: #{tpu_custom_call.1} parent=11 // pred_region
          _
        $region24: #{tpu_custom_call.1} parent=11 // pred_fallthru
          _
        // Predicated region
        $region25: #{tpu_custom_call.1} parent=11 // pred_check
          %p215 = pneg %p123
        $region26: #{tpu_custom_call.1} parent=11 // pred_check_branch
          %217 = sbr.rel (%p215) target = $region28
        $region27: #{tpu_custom_call.1} parent=11 // pred_region
          _
        $region28: #{tpu_custom_call.1} parent=11 // pred_fallthru
          _
        // Predicated region
        $region29: #{tpu_custom_call.1} parent=11 // pred_check
          %p218 = pneg %p144
        $region30: #{tpu_custom_call.1} parent=11 // pred_check_branch
          %220 = sbr.rel (%p218) target = $region32
        $region31: #{tpu_custom_call.1} parent=11 // pred_region
          _
        $region32: #{tpu_custom_call.1} parent=11 // pred_fallthru
          _
        // Predicated region
        $region33: #{tpu_custom_call.1} parent=11 // pred_check
          %p221 = pneg %p165
        $region34: #{tpu_custom_call.1} parent=11 // pred_check_branch
          %223 = sbr.rel (%p221) target = $region36
        $region35: #{tpu_custom_call.1} parent=11 // pred_region
          _
        $region36: #{tpu_custom_call.1} parent=11 // pred_fallthru
          _
      $region12: #{tpu_custom_call.1} parent=5 // pred_fallthru
        _
      %p224 = scmp.lt.s32.totalorder %s13, 7
      // Predicated region
      $region37: #{tpu_custom_call.1} parent=5 // pred_check
        %p225 = pneg %p224
      $region38: #{tpu_custom_call.1} parent=5 // pred_check_branch
        %227 = sbr.rel (%p225) target = $region40
      $region39: #{tpu_custom_call.1} parent=5 // pred_region
        // Predicated region
        $region41: #{tpu_custom_call.1} parent=39 // pred_check
          %p228 = pneg %p33
        $region42: #{tpu_custom_call.1} parent=39 // pred_check_branch
          %230 = sbr.rel (%p228) target = $region44
        $region43: #{tpu_custom_call.1} parent=39 // pred_region
          %s231 = smul.u32 4, %s13
          %s232 = ssub.s32 25, %s231
          %p233 = scmp.lt.s32.totalorder %s232, 4
          %s234 = scalar_select %p233, %s232, 4
          %s235 = smul.u32 128, %s234
          %p236 = scmp.lt.s32.totalorder %s231, 24
          %s237 = scalar_select %p236, %s231, 24
          %s238 = smul.addr %s237, 8
          %s239 = scalar_lea.vmem %s0, %s238
          %s240 = smul.u32 4, %s13
          %s241 = ssub.s32 25, %s240
          %p242 = scmp.lt.s32.totalorder %s241, 4
          %s243 = scalar_select %p242, %s241, 4
          %s244 = smul.u32 128, %s243
        $region44: #{tpu_custom_call.1} parent=39 // pred_fallthru
          _
      $region40: #{tpu_custom_call.1} parent=5 // pred_fallthru
        _
      %p245 = scmp.le.s32.totalorder 1, %s13
      %p246 = scmp.lt.s32.totalorder %s13, 8
      %p247 = pnand %p245, %p246
      %p248 = pneg %p247
      // Predicated region
      $region45: #{tpu_custom_call.1} parent=5 // pred_check
        _
      $region46: #{tpu_custom_call.1} parent=5 // pred_check_branch
        %250 = sbr.rel (%p247) target = $region48
      $region47: #{tpu_custom_call.1} parent=5 // pred_region
        %s251 = ssub.s32 %s13, 1
        %s252 = smul.u32 4, %s18
        %s253 = ssub.s32 25, %s252
        %p254 = scmp.lt.s32.totalorder %s253, 4
        %s255 = scalar_select %p254, %s253, 4
        %s256 = smul.u32 128, %s255
        %p257 = scmp.lt.s32.totalorder %s252, 24
        %s258 = scalar_select %p257, %s252, 24
        %s259 = smul.addr %s258, 8
        %s260 = scalar_lea.vmem %s0, %s259
        %p261 = pneg %p39
        %p262 = pneg %p36
        %p263 = pneg %p60
        %p264 = pneg %p57
        %p265 = pneg %p81
        %p266 = pneg %p78
        %p267 = pneg %p102
        %p268 = pneg %p99
        %p269 = pneg %p123
        %p270 = pneg %p120
        %p271 = pneg %p144
        %p272 = pneg %p141
        %p273 = pneg %p165
        %p274 = pneg %p162
        %p275 = pneg %p191
        %p276 = pneg %p188
        %s277 = sand.u32 %s178, 1
        %s278 = sand.u32 %s178, 1
        %s279 = smul.addr %s278, 32
        %s280 = scalar_lea.vmem [#allocation2], %s279
        %s281 = smul.u32 4, %s18
        %s282 = ssub.s32 25, %s281
        %p283 = scmp.lt.s32.totalorder %s282, 4
        %s284 = scalar_select %p283, %s282, 4
        %s285 = smul.u32 128, %s284
        %p286 = scmp.lt.s32.totalorder %s281, 24
        %s287 = scalar_select %p286, %s281, 24
        %s288 = smul.addr %s287, 8
        %s289 = scalar_lea.vmem %s0, %s288
        %s290 = smul.u32 4, %s18
        %s291 = ssub.s32 25, %s290
        %p292 = scmp.lt.s32.totalorder %s291, 4
        %s293 = scalar_select %p292, %s291, 4
        %s294 = smul.u32 128, %s293
        %s295 = smul.u32 4, %s18
        %s296 = ssub.s32 25, %s295
        %p297 = scmp.lt.s32.totalorder %s296, 4
        %s298 = scalar_select %p297, %s296, 4
        %s299 = smul.u32 128, %s298
        %v301 = vld [vmem:[%s289] sm:$0xff]
        %v302 = vld [vmem:[%s289 + $0x8] sm:$0xff]
        %v303 = vld [vmem:[%s289 + $0x10] sm:$0xff]
        %v304 = vld [vmem:[%s289 + $0x18] sm:$0xff]
        %v305 = vpack.c.bf16 %v302, %v301
        %v306 = vpack.c.bf16 %v304, %v303
        %v307 = vld [vmem:[%s1] sm:$0xf]
        %v308 = vld [vmem:[%s1 + $0x4] sm:$0xf]
        %v309 = vld [vmem:[%s1 + $0x8] sm:$0xf]
        %v310 = vld [vmem:[%s1 + $0xc] sm:$0xf]
        %v311 = vld [vmem:[%s2] sm:$0x1]
        %v313 = vlaneseq
        %v314 = vshrl.u32 %v313, 7
        %v315 = vsub.s32 0, %v314
        %v316 = vrot.slane %v311, %v315
        %v322 = vunpack.c.l.b16 %v307
        %v323 = vunpack.c.l.b16 %v308
        %v324 = vunpack.c.l.b16 %v309
        %v325 = vunpack.c.l.b16 %v310
        %v326 = vpack.c.b16 %v323, %v322
        %v327 = vpack.c.b16 %v325, %v324
        %vm330 = vcmask 261120
        %v332 = vsel %vm330, %v305, 0
        %v335 = vsel %vm330, %v306, 0
        %337 = vmatprep.subr.bf16.mxu0 0
        %338 = vmatpush1.bf16.msra.mxu0 0
        %339 = vmatprep.subr.bf16.mxu0 0
        %340 = vmatpush1.bf16.msra.mxu0 0
        %341 = vmatprep.subr.bf16.mxu0 0
        %342 = vmatpush1.bf16.msra.mxu0 0
        %343 = vmatprep.subr.bf16.mxu0 0
        %344 = vmatpush1.bf16.msra.mxu0 0
        %345 = vmatprep.subr.bf16.mxu0 0
        %346 = vmatpush1.bf16.msra.mxu0 0
        %347 = vmatprep.subr.bf16.mxu0 0
        %348 = vmatpush1.bf16.msra.mxu0 0
        %349 = vmatprep.subr.bf16.mxu0 0
        %350 = vmatpush1.bf16.msra.mxu0 %v327
        %351 = vmatprep.subr.bf16.mxu0 0
        %352 = vmatpush1.bf16.msra.mxu0 %v326
        %353 = vmatprep.subr.bf16.mxu0 0
        %354 = vmatpush2.bf16.msra.mxu0 0
        %355 = vmatprep.subr.bf16.mxu0 0
        %356 = vmatpush2.bf16.msra.mxu0 0
        %357 = vmatprep.subr.bf16.mxu0 0
        %358 = vmatpush2.bf16.msra.mxu0 0
        %359 = vmatprep.subr.bf16.mxu0 0
        %360 = vmatpush2.bf16.msra.mxu0 0
        %361 = vmatprep.subr.bf16.mxu0 0
        %362 = vmatpush2.bf16.msra.mxu0 0
        %363 = vmatprep.subr.bf16.mxu0 0
        %364 = vmatpush2.bf16.msra.mxu0 0
        %365 = vmatprep.subr.bf16.mxu0 0
        %366 = vmatpush2.bf16.msra.mxu0 0
        %367 = vmatprep.subr.bf16.mxu0 0
        %368 = vmatpush2.bf16.msra.mxu0 0
        %369 = vmatprep.mubr.bf16.mxu0 0
        %370 = vmatmul.mubr.bf16.gmra.mxu0 %v332
        %v371 = vpop.f32.mrf.mxu0
        %v372 = vadd.f32 %v316, %v371
        %v373 = vpop.f32.mrf.mxu0
        %v374 = vpop.f32.mrf.mxu0
        %v375 = vadd.f32 %v316, %v374
        %v376 = vpop.f32.mrf.mxu0
        %377 = vmatprep.mubr.bf16.mxu0 0
        %378 = vmatmul.mubr.bf16.gmra.mxu0 %v335
        %v379 = vpop.f32.mrf.mxu0
        %v380 = vadd.f32 %v316, %v379
        %v381 = vpop.f32.mrf.mxu0
        %v382 = vpop.f32.mrf.mxu0
        %v383 = vadd.f32 %v316, %v382
        %v384 = vpop.f32.mrf.mxu0
        %385 = vdwg.mxu0
        %v386 = vmax.f32 %v372, 0.0
        %v387 = vmax.f32 %v375, 0.0
        %v388 = vmax.f32 %v380, 0.0
        %v389 = vmax.f32 %v383, 0.0
        %v390 = vpack.c.bf16 %v387, %v386
        %v391 = vpack.c.bf16 %v389, %v388
        %v392 = vld [vmem:[%s3] sm:$0xf]
        %v393 = vld [vmem:[%s3 + $0x4] sm:$0xf]
        %v394 = vld [vmem:[%s3 + $0x8] sm:$0xf]
        %v395 = vld [vmem:[%s3 + $0xc] sm:$0xf]
        %v396 = vld [vmem:[%s3 + $0x10] sm:$0xf]
        %v397 = vld [vmem:[%s3 + $0x14] sm:$0xf]
        %v398 = vld [vmem:[%s3 + $0x18] sm:$0xf]
        %v399 = vld [vmem:[%s3 + $0x1c] sm:$0xf]
        %v400 = vld [vmem:[%s4] sm:$0x1]
        %v402 = vlaneseq
        %v403 = vshrl.u32 %v402, 7
        %v404 = vsub.s32 0, %v403
        %v405 = vrot.slane %v400, %v404
        %v415 = vunpack.c.l.b16 %v392
        %v416 = vunpack.c.l.b16 %v393
        %v417 = vunpack.c.l.b16 %v394
        %v418 = vunpack.c.l.b16 %v395
        %v419 = vunpack.c.l.b16 %v396
        %v420 = vunpack.c.l.b16 %v397
        %v421 = vunpack.c.l.b16 %v398
        %v422 = vunpack.c.l.b16 %v399
        %v423 = vpack.c.b16 %v416, %v415
        %v424 = vpack.c.b16 %v418, %v417
        %v425 = vpack.c.b16 %v420, %v419
        %v426 = vpack.c.b16 %v422, %v421
        %vm431 = vcmask 523264
        %v433 = vsel %vm431, %v390, 0
        %v436 = vsel %vm431, %v391, 0
        %438 = vmatprep.subr.bf16.mxu0 0
        %439 = vmatpush1.bf16.msra.mxu0 0
        %440 = vmatprep.subr.bf16.mxu0 0
        %441 = vmatpush1.bf16.msra.mxu0 0
        %442 = vmatprep.subr.bf16.mxu0 0
        %443 = vmatpush1.bf16.msra.mxu0 0
        %444 = vmatprep.subr.bf16.mxu0 0
        %445 = vmatpush1.bf16.msra.mxu0 0
        %446 = vmatprep.subr.bf16.mxu0 0
        %447 = vmatpush1.bf16.msra.mxu0 %v426
        %448 = vmatprep.subr.bf16.mxu0 0
        %449 = vmatpush1.bf16.msra.mxu0 %v425
        %450 = vmatprep.subr.bf16.mxu0 0
        %451 = vmatpush1.bf16.msra.mxu0 %v424
        %452 = vmatprep.subr.bf16.mxu0 0
        %453 = vmatpush1.bf16.msra.mxu0 %v423
        %454 = vmatprep.subr.bf16.mxu0 0
        %455 = vmatpush2.bf16.msra.mxu0 0
        %456 = vmatprep.subr.bf16.mxu0 0
        %457 = vmatpush2.bf16.msra.mxu0 0
        %458 = vmatprep.subr.bf16.mxu0 0
        %459 = vmatpush2.bf16.msra.mxu0 0
        %460 = vmatprep.subr.bf16.mxu0 0
        %461 = vmatpush2.bf16.msra.mxu0 0
        %462 = vmatprep.subr.bf16.mxu0 0
        %463 = vmatpush2.bf16.msra.mxu0 0
        %464 = vmatprep.subr.bf16.mxu0 0
        %465 = vmatpush2.bf16.msra.mxu0 0
        %466 = vmatprep.subr.bf16.mxu0 0
        %467 = vmatpush2.bf16.msra.mxu0 0
        %468 = vmatprep.subr.bf16.mxu0 0
        %469 = vmatpush2.bf16.msra.mxu0 0
        %470 = vmatprep.mubr.bf16.mxu0 0
        %471 = vmatmul.mubr.bf16.gmra.mxu0 %v433
        %v472 = vpop.f32.mrf.mxu0
        %v473 = vadd.f32 %v405, %v472
        %v474 = vpop.f32.mrf.mxu0
        %v475 = vpop.f32.mrf.mxu0
        %v476 = vadd.f32 %v405, %v475
        %v477 = vpop.f32.mrf.mxu0
        %478 = vmatprep.mubr.bf16.mxu0 0
        %479 = vmatmul.mubr.bf16.gmra.mxu0 %v436
        %v480 = vpop.f32.mrf.mxu0
        %v481 = vadd.f32 %v405, %v480
        %v482 = vpop.f32.mrf.mxu0
        %v483 = vpop.f32.mrf.mxu0
        %v484 = vadd.f32 %v405, %v483
        %v485 = vpop.f32.mrf.mxu0
        %486 = vdwg.mxu0
        %v487 = vmax.f32 %v473, 0.0
        %v488 = vmax.f32 %v476, 0.0
        %v489 = vmax.f32 %v481, 0.0
        %v490 = vmax.f32 %v484, 0.0
        %v491 = vpack.c.bf16 %v488, %v487
        %v492 = vpack.c.bf16 %v490, %v489
        %v493 = vld [vmem:[%s5] sm:$0xf]
        %v494 = vld [vmem:[%s5 + $0x4] sm:$0xf]
        %v495 = vld [vmem:[%s6] sm:$0x1]
        %v497 = vlaneseq
        %v498 = vshrl.u32 %v497, 7
        %v499 = vsub.s32 0, %v498
        %v500 = vrot.slane %v495, %v499
        %v504 = vunpack.c.l.b16 %v493
        %v505 = vunpack.c.l.b16 %v494
        %v506 = vpack.c.b16 %v505, %v504
        %vm508 = vcmask 130048
        %v510 = vsel %vm508, %v491, 0
        %v513 = vsel %vm508, %v492, 0
        %515 = vmatprep.subr.bf16.mxu0 0
        %516 = vmatpush1.bf16.msra.mxu0 0
        %517 = vmatprep.subr.bf16.mxu0 0
        %518 = vmatpush1.bf16.msra.mxu0 0
        %519 = vmatprep.subr.bf16.mxu0 0
        %520 = vmatpush1.bf16.msra.mxu0 0
        %521 = vmatprep.subr.bf16.mxu0 0
        %522 = vmatpush1.bf16.msra.mxu0 0
        %523 = vmatprep.subr.bf16.mxu0 0
        %524 = vmatpush1.bf16.msra.mxu0 0
        %525 = vmatprep.subr.bf16.mxu0 0
        %526 = vmatpush1.bf16.msra.mxu0 0
        %527 = vmatprep.subr.bf16.mxu0 0
        %528 = vmatpush1.bf16.msra.mxu0 0
        %529 = vmatprep.subr.bf16.mxu0 0
        %530 = vmatpush1.bf16.msra.mxu0 %v506
        %531 = vmatprep.subr.bf16.mxu0 0
        %532 = vmatpush2.bf16.msra.mxu0 0
        %533 = vmatprep.subr.bf16.mxu0 0
        %534 = vmatpush2.bf16.msra.mxu0 0
        %535 = vmatprep.subr.bf16.mxu0 0
        %536 = vmatpush2.bf16.msra.mxu0 0
        %537 = vmatprep.subr.bf16.mxu0 0
        %538 = vmatpush2.bf16.msra.mxu0 0
        %539 = vmatprep.subr.bf16.mxu0 0
        %540 = vmatpush2.bf16.msra.mxu0 0
        %541 = vmatprep.subr.bf16.mxu0 0
        %542 = vmatpush2.bf16.msra.mxu0 0
        %543 = vmatprep.subr.bf16.mxu0 0
        %544 = vmatpush2.bf16.msra.mxu0 0
        %545 = vmatprep.subr.bf16.mxu0 0
        %546 = vmatpush2.bf16.msra.mxu0 0
        %547 = vmatprep.mubr.bf16.mxu0 0
        %548 = vmatmul.mubr.bf16.gmra.mxu0 %v510
        %v549 = vpop.f32.mrf.mxu0
        %v550 = vadd.f32 %v500, %v549
        %v551 = vpop.f32.mrf.mxu0
        %v552 = vpop.f32.mrf.mxu0
        %v553 = vadd.f32 %v500, %v552
        %v554 = vpop.f32.mrf.mxu0
        %555 = vmatprep.mubr.bf16.mxu0 0
        %556 = vmatmul.mubr.bf16.gmra.mxu0 %v513
        %v557 = vpop.f32.mrf.mxu0
        %v558 = vadd.f32 %v500, %v557
        %v559 = vpop.f32.mrf.mxu0
        %v560 = vpop.f32.mrf.mxu0
        %v561 = vadd.f32 %v500, %v560
        %v562 = vpop.f32.mrf.mxu0
        %563 = vdwg.mxu0
        %vm564 = vcmask 64512
        %565 = vst.msk [vmem:[%s280] sm:$0xff] %vm564, %v550
        %566 = vst.msk [vmem:[%s280 + $0x8] sm:$0xff] %vm564, %v553
        %567 = vst.msk [vmem:[%s280 + $0x10] sm:$0xff] %vm564, %v558
        %568 = vst.msk [vmem:[%s280 + $0x18] sm:$0xff] %vm564, %v561
        %s569 = sand.u32 %s178, 1
        %s570 = sand.u32 %s178, 1
        %s571 = smul.addr %s570, 32
        %s572 = scalar_lea.vmem [#allocation2], %s571
        // Predicated region
        $region49: #{tpu_custom_call.1} parent=47 // pred_check
          %p573 = pneg %p188
        $region50: #{tpu_custom_call.1} parent=47 // pred_check_branch
          %575 = sbr.rel (%p573) target = $region52
        $region51: #{tpu_custom_call.1} parent=47 // pred_region
          %s576 = smul.u32 4, %s18
          %s577 = ssub.s32 25, %s576
          %p578 = scmp.lt.s32.totalorder %s577, 4
          %s579 = scalar_select %p578, %s577, 4
          %s580 = smul.u32 128, %s579
          %p581 = scmp.ne.s32.totalorder 0, %s580
          %s582 = smul.addr %s576, 8
          %s583 = scalar_lea.vmem %s7, %s582
          // Predicated region
          $region53: #{tpu_custom_call.1} parent=51 // pred_check
            %p584 = pneg %p581
          $region54: #{tpu_custom_call.1} parent=51 // pred_check_branch
            %586 = sbr.rel (%p584) target = $region56
          $region55: #{tpu_custom_call.1} parent=51 // pred_region
            // Predicated region
            $region57: #{tpu_custom_call.1} parent=55 // pred_check
              _
            $region58: #{tpu_custom_call.1} parent=55 // pred_check_branch
              %588 = sbr.rel (0) target = $region60
            $region59: #{tpu_custom_call.1} parent=55 // pred_region
              // Predicated region
              $region79: #{tpu_custom_call.1} parent=59 // pred_check
                _
              $region80: #{tpu_custom_call.1} parent=59 // pred_check_branch
                %644 = sbr.rel (0) target = $region82
              $region81: #{tpu_custom_call.1} parent=59 // pred_region
                %s645 = sshrl.u32 %s579, 2
                // While loop
                $region83: #{tpu_custom_call.1} parent=81 // loop_pre_header
                  _
                $region84: #{tpu_custom_call.1} parent=81 // loop_header
                  %s647 = sphi 0, %s649
                  %p648 = scmp.ge.s32.totalorder %s647, %s645
                  %s652 = sphi 0, %s665
                  %s653 = sphi %s572, %s668
                  %s654 = sphi %s583, %s669
                $region85: #{tpu_custom_call.1} parent=81 // loop_header_branch
                  %651 = sbr.rel (%p648) target = $region89
                $region86: #{tpu_custom_call.1} parent=81 // loop_body
                  %v655 = vld [vmem:[%s653] sm:$0xff]
                  %656 = vst [vmem:[%s654] sm:$0xff] %v655
                  %v657 = vld [vmem:[%s653 + $0x8] sm:$0xff]
                  %658 = vst [vmem:[%s654 + $0x8] sm:$0xff] %v657
                  %v659 = vld [vmem:[%s653 + $0x10] sm:$0xff]
                  %660 = vst [vmem:[%s654 + $0x10] sm:$0xff] %v659
                  %v661 = vld [vmem:[%s653 + $0x18] sm:$0xff]
                  %662 = vst [vmem:[%s654 + $0x18] sm:$0xff] %v661
                  %s663 = sadd.s32 1, %s652
                  %p664 = scmp.ge.s32.totalorder %s663, %s645
                  %s665 = scalar_select %p664, 0, %s663
                  %s666 = smul.u32 %s665, 32
                  %s667 = smul.u32 %s665, 32
                  %s668 = scalar_lea.vmem %s572, %s666 [#allocation2]
                  %s669 = scalar_lea.vmem %s583, %s667
                $region87: #{tpu_custom_call.1} parent=81 // loop_footer
                  %s649 = sadd.s32 %s647, 1
                $region88: #{tpu_custom_call.1} parent=81 // loop_footer_branch
                  %646 = sbr.rel target = $region84
                $region89: #{tpu_custom_call.1} parent=81 // loop_exit
                  _
                %s670 = sshrl.u32 %s579, 2
                %s671 = sand.u32 %s579, 3
                %s672 = smul.u32 %s670, 4
                %s673 = smul.u32 8, %s672
                %s674 = scalar_lea.vmem %s572, %s673 [#allocation2]
                %s675 = smul.u32 8, %s672
                %s676 = scalar_lea.vmem %s583, %s675
                // While loop
                $region90: #{tpu_custom_call.1} parent=81 // loop_pre_header
                  _
                $region91: #{tpu_custom_call.1} parent=81 // loop_header
                  %s678 = sphi 0, %s680
                  %p679 = scmp.ge.s32.totalorder %s678, %s671
                  %s683 = sphi 0, %s690
                  %s684 = sphi %s674, %s693
                  %s685 = sphi %s676, %s694
                $region92: #{tpu_custom_call.1} parent=81 // loop_header_branch
                  %682 = sbr.rel (%p679) target = $region96
                $region93: #{tpu_custom_call.1} parent=81 // loop_body
                  %v686 = vld [vmem:[%s684] sm:$0xff]
                  %687 = vst [vmem:[%s685] sm:$0xff] %v686
                  %s688 = sadd.s32 1, %s683
                  %p689 = scmp.ge.s32.totalorder %s688, %s671
                  %s690 = scalar_select %p689, 0, %s688
                  %s691 = smul.u32 %s690, 8
                  %s692 = smul.u32 %s690, 8
                  %s693 = scalar_lea.vmem %s674, %s691 [#allocation2]
                  %s694 = scalar_lea.vmem %s676, %s692
                $region94: #{tpu_custom_call.1} parent=81 // loop_footer
                  %s680 = sadd.s32 %s678, 1
                $region95: #{tpu_custom_call.1} parent=81 // loop_footer_branch
                  %677 = sbr.rel target = $region91
                $region96: #{tpu_custom_call.1} parent=81 // loop_exit
                  _
              $region82: #{tpu_custom_call.1} parent=59 // pred_fallthru
                _
              // Predicated region
              $region97: #{tpu_custom_call.1} parent=59 // pred_check
                _
              $region98: #{tpu_custom_call.1} parent=59 // pred_check_branch
                %696 = sbr.rel target = $region100
              $region99: #{tpu_custom_call.1} parent=59 // pred_region
                _
              $region100: #{tpu_custom_call.1} parent=59 // pred_fallthru
                _
            $region60: #{tpu_custom_call.1} parent=55 // pred_fallthru
              _
            // Predicated region
            $region61: #{tpu_custom_call.1} parent=55 // pred_check
              _
            $region62: #{tpu_custom_call.1} parent=55 // pred_check_branch
              %590 = sbr.rel target = $region64
            $region63: #{tpu_custom_call.1} parent=55 // pred_region
              %s592 = ssub.s32 256, 1
              %s593 = sshrl.u32 %s579, 2
              // While loop
              $region65: #{tpu_custom_call.1} parent=63 // loop_pre_header
                _
              $region66: #{tpu_custom_call.1} parent=63 // loop_header
                %s595 = sphi 0, %s597
                %p596 = scmp.ge.s32.totalorder %s595, %s593
                %s600 = sphi 0, %s613
                %s601 = sphi %s572, %s616
                %s602 = sphi %s583, %s617
              $region67: #{tpu_custom_call.1} parent=63 // loop_header_branch
                %599 = sbr.rel (%p596) target = $region71
              $region68: #{tpu_custom_call.1} parent=63 // loop_body
                %v603 = vld [vmem:[%s601] sm:%s592]
                %604 = vst [vmem:[%s602] sm:%s592] %v603
                %v605 = vld [vmem:[%s601 + $0x8] sm:%s592]
                %606 = vst [vmem:[%s602 + $0x8] sm:%s592] %v605
                %v607 = vld [vmem:[%s601 + $0x10] sm:%s592]
                %608 = vst [vmem:[%s602 + $0x10] sm:%s592] %v607
                %v609 = vld [vmem:[%s601 + $0x18] sm:%s592]
                %610 = vst [vmem:[%s602 + $0x18] sm:%s592] %v609
                %s611 = sadd.s32 1, %s600
                %p612 = scmp.ge.s32.totalorder %s611, %s593
                %s613 = scalar_select %p612, 0, %s611
                %s614 = smul.u32 %s613, 32
                %s615 = smul.u32 %s613, 32
                %s616 = scalar_lea.vmem %s572, %s614 [#allocation2]
                %s617 = scalar_lea.vmem %s583, %s615
              $region69: #{tpu_custom_call.1} parent=63 // loop_footer
                %s597 = sadd.s32 %s595, 1
              $region70: #{tpu_custom_call.1} parent=63 // loop_footer_branch
                %594 = sbr.rel target = $region66
              $region71: #{tpu_custom_call.1} parent=63 // loop_exit
                _
              %s618 = sshrl.u32 %s579, 2
              %s619 = sand.u32 %s579, 3
              %s620 = smul.u32 %s618, 4
              %s621 = smul.u32 8, %s620
              %s622 = scalar_lea.vmem %s572, %s621 [#allocation2]
              %s623 = smul.u32 8, %s620
              %s624 = scalar_lea.vmem %s583, %s623
              // While loop
              $region72: #{tpu_custom_call.1} parent=63 // loop_pre_header
                _
              $region73: #{tpu_custom_call.1} parent=63 // loop_header
                %s626 = sphi 0, %s628
                %p627 = scmp.ge.s32.totalorder %s626, %s619
                %s631 = sphi 0, %s638
                %s632 = sphi %s622, %s641
                %s633 = sphi %s624, %s642
              $region74: #{tpu_custom_call.1} parent=63 // loop_header_branch
                %630 = sbr.rel (%p627) target = $region78
              $region75: #{tpu_custom_call.1} parent=63 // loop_body
                %v634 = vld [vmem:[%s632] sm:%s592]
                %635 = vst [vmem:[%s633] sm:%s592] %v634
                %s636 = sadd.s32 1, %s631
                %p637 = scmp.ge.s32.totalorder %s636, %s619
                %s638 = scalar_select %p637, 0, %s636
                %s639 = smul.u32 %s638, 8
                %s640 = smul.u32 %s638, 8
                %s641 = scalar_lea.vmem %s622, %s639 [#allocation2]
                %s642 = scalar_lea.vmem %s624, %s640
              $region76: #{tpu_custom_call.1} parent=63 // loop_footer
                %s628 = sadd.s32 %s626, 1
              $region77: #{tpu_custom_call.1} parent=63 // loop_footer_branch
                %625 = sbr.rel target = $region73
              $region78: #{tpu_custom_call.1} parent=63 // loop_exit
                _
            $region64: #{tpu_custom_call.1} parent=55 // pred_fallthru
              _
          $region56: #{tpu_custom_call.1} parent=51 // pred_fallthru
            _
          %697 = vnop
        $region52: #{tpu_custom_call.1} parent=47 // pred_fallthru
          _
      $region48: #{tpu_custom_call.1} parent=5 // pred_fallthru
        _
      %p698 = scmp.le.s32.totalorder 2, %s13
      // Predicated region
      $region101: #{tpu_custom_call.1} parent=5 // pred_check
        %p699 = pneg %p698
      $region102: #{tpu_custom_call.1} parent=5 // pred_check_branch
        %701 = sbr.rel (%p699) target = $region104
      $region103: #{tpu_custom_call.1} parent=5 // pred_region
        %s702 = ssub.s32 %s13, 2
        // Predicated region
        $region105: #{tpu_custom_call.1} parent=103 // pred_check
          %p703 = pneg %p194
        $region106: #{tpu_custom_call.1} parent=103 // pred_check_branch
          %705 = sbr.rel (%p703) target = $region108
        $region107: #{tpu_custom_call.1} parent=103 // pred_region
          %s706 = sand.u32 %s179, 1
          %s707 = sand.u32 %s179, 1
          %s708 = smul.addr %s707, 32
          %s709 = scalar_lea.vmem [#allocation2], %s708
        $region108: #{tpu_custom_call.1} parent=103 // pred_fallthru
          _
      $region104: #{tpu_custom_call.1} parent=5 // pred_fallthru
        _
    $region6: #{tpu_custom_call.1} parent=1 // loop_footer
      %s17 = sadd.s32 1, %s13
    $region7: #{tpu_custom_call.1} parent=1 // loop_footer_branch
      %12 = sbr.rel target = $region3
    $region8: #{tpu_custom_call.1} parent=1 // loop_exit
      _

</llo_original>
